<compile_context>
chip_gen: v6e
topology: v6e:2x2x1
jax: 0.10.0
libtpu: 0.0.40
codegen_flags: <defaults>
</compile_context>

<pallas_src>
import functools

import jax
import jax.numpy as jnp
from jax.experimental import pallas as pl
from jax.experimental.pallas import tpu as pltpu

VOCAB = 30        # nn.Embedding(30, D)
VOCAB_PAD = 32    # pad vocab to a nice MXU contraction size


def _round_up(x, m):
    return ((x + m - 1) // m) * m


def _apply_bert_mask(token_id, aa_mask, key):
    """Pure-JAX equivalent of the torch masking logic (used by wrapper & tests)."""
    k1, k2 = jax.random.split(key)
    prob = jax.random.uniform(k1, token_id.shape, dtype=jnp.float32)
    rand = jax.random.randint(k2, token_id.shape, 1, 26, dtype=jnp.int32)
    m = jnp.where(prob < 0.8, jnp.int32(27), token_id)
    m = jnp.where((prob >= 0.8) & (prob < 0.9), rand, m)
    return jnp.where(aa_mask.astype(bool), m, token_id)


def _embed_kernel(tok_ref, table_ref, out_ref, *, groups):
    """One-hot @ table embedding lookup for one row tile.

    tok_ref:   (R, G) int32   masked token ids, already offset by g*VOCAB_PAD
    table_ref: (G*VOCAB_PAD, G*D) f32 block-diagonal replicated table
    out_ref:   (R, G*D) f32
    """
    tok = tok_ref[...]
    rows = tok.shape[0]
    k = table_ref.shape[0]
    col = jax.lax.broadcasted_iota(jnp.int32, (rows, k), 1)
    hit = col == tok[:, 0:1]
    for g in range(1, groups):
        hit = hit | (col == tok[:, g:g + 1])
    onehot = hit.astype(table_ref.dtype)                     # (R, G*VOCAB_PAD)
    out_ref[...] = jnp.dot(
        onehot, table_ref[...], preferred_element_type=jnp.float32
    ).astype(out_ref.dtype)


def _choose_tokens_per_step(n_tokens, d, groups):
    """Tokens processed per grid step (HBM-write-bound -> go big, cap by VMEM)."""
    # Double-buffered f32 output block must stay well inside v7x's VMEM.
    budget_bytes = 20 * 1024 * 1024
    t = min(2048, budget_bytes // (2 * d * 4))
    align = max(256, 8 * groups)          # keeps sublane dim a multiple of 8
    t = max(align, (t // align) * align)
    # Don't massively over-pad tiny inputs.
    t = min(t, _round_up(n_tokens, align))
    # Prefer >= 2 grid steps so v7x's 2 TensorCores both get work.
    if -(-n_tokens // t) == 1 and n_tokens > align:
        t = max(align, _round_up((n_tokens + 1) // 2, align))
    return t


def msagen_seq_embedding(token_type, embed_table, aa_mask=None, key=None,
                         padding_mask=None):
    """Pallas implementation of MSAGenSeqEmbedding.forward.

    token_type:  (B, L) int32
    embed_table: (30, D) float32  -- the nn.Embedding weight
    aa_mask:     optional (B, L) bool
    key:         PRNG key for the masking randomness when aa_mask is given
    Returns:     (B, L, D) float32
    """
    # padding_mask accepted but unused, exactly like the torch module.
    del padding_mask
    B, L = token_type.shape
    D = embed_table.shape[1]
    N = B * L

    tok = token_type.astype(jnp.int32)
    if aa_mask is not None:
        assert key is not None, "key required when aa_mask is provided"
        tok = _apply_bert_mask(tok, aa_mask, key)
    tok = tok.reshape(N)

    # Lane-dense packing: G consecutive tokens per output row (G*D == 128)
    # when D < 128 and divides 128; otherwise 1 token per row.
    groups = 128 // D if (D < 128 and 128 % D == 0) else 1
    # Note: if D > 128 and D % 128 != 0, output stores are partially masked;
    # full-rate stores need D to be a multiple of 128.

    tokens_per_step = _choose_tokens_per_step(N, D, groups)
    steps = -(-N // tokens_per_step)
    Npad = steps * tokens_per_step
    tile_r = tokens_per_step // groups
    r_total = Npad // groups

    # Single packed int32 token input (padded tokens -> id 0, sliced off later),
    # pre-offset so each group's one-hot lands in its own VOCAB_PAD-wide band.
    tok_p = jnp.pad(tok, (0, Npad - N))
    offs = (jnp.arange(groups, dtype=jnp.int32) * VOCAB_PAD)[None, :]
    tok_g = tok_p.reshape(r_total, groups) + offs

    # Vocab padded with zero rows (30, 31 never selected); block-diagonal
    # replication when packing G tokens per row.
    table_pad = jnp.zeros((VOCAB_PAD, D), embed_table.dtype)
    table_pad = table_pad.at[:VOCAB].set(embed_table)
    if groups == 1:
        table_big = table_pad
    else:
        table_big = jnp.zeros((groups * VOCAB_PAD, groups * D),
                              embed_table.dtype)
        for g in range(groups):
            table_big = table_big.at[
                g * VOCAB_PAD:(g + 1) * VOCAB_PAD, g * D:(g + 1) * D
            ].set(table_pad)

    kernel = functools.partial(_embed_kernel, groups=groups)

    out = pl.pallas_call(
        kernel,
        out_shape=jax.ShapeDtypeStruct((r_total, groups * D), jnp.float32),
        grid_spec=pltpu.PrefetchScalarGridSpec(
            num_scalar_prefetch=0,
            grid=(steps,),
            in_specs=[
                pl.BlockSpec((tile_r, groups), lambda i: (i, 0)),       # tokens
                pl.BlockSpec((groups * VOCAB_PAD, groups * D),
                             lambda i: (0, 0)),                         # table
            ],
            out_specs=pl.BlockSpec((tile_r, groups * D), lambda i: (i, 0)),
        ),
        compiler_params=pltpu.CompilerParams(
            dimension_semantics=("parallel",),
            vmem_limit_bytes=28 * 1024 * 1024,
        ),
    )(tok_g, table_big)

    return out.reshape(Npad, D)[:N].reshape(B, L, D)


if __name__ == "__main__":
    key = jax.random.PRNGKey(0)
    k_tab, k_tok, k_mask, k_rng, k_tab2, k_tok2 = jax.random.split(key, 6)

    # ---- Config 1: encoder_embed_dim=32 -> lane-packed path (G=4) ----
    B, L, D = 2, 8, 32
    embed_table = jax.random.normal(k_tab, (VOCAB, D), dtype=jnp.float32)
    token_type = jax.random.randint(k_tok, (B, L), 0, VOCAB, dtype=jnp.int32)
    aa_mask = jax.random.bernoulli(k_mask, 0.3, (B, L))

    ref_plain = jnp.take(embed_table, token_type, axis=0)

    # Path 1: aa_mask is None -> plain embedding lookup.
    out_plain = jax.block_until_ready(
        msagen_seq_embedding(token_type, embed_table))
    assert out_plain.shape == (B, L, D)
    assert jnp.allclose(out_plain, ref_plain, atol=1e-5), "plain path mismatch"

    # Path 2: aa_mask given -> BERT-style masking (precomputed in wrapper).
    out_masked = jax.block_until_ready(
        msagen_seq_embedding(token_type, embed_table,
                             aa_mask=aa_mask, key=k_rng))
    masked_ids = _apply_bert_mask(token_type, aa_mask, k_rng)
    ref_masked = jnp.take(embed_table, masked_ids, axis=0)
    assert out_masked.shape == (B, L, D)
    assert jnp.allclose(out_masked, ref_masked, atol=1e-5), "masked path mismatch"

    # ---- Config 2: D=128 (G=1), longer sequence -> multi-step grid ----
    B2, L2, D2 = 4, 200, 128
    table2 = jax.random.normal(k_tab2, (VOCAB, D2), dtype=jnp.float32)
    tok2 = jax.random.randint(k_tok2, (B2, L2), 0, VOCAB, dtype=jnp.int32)
    out2 = jax.block_until_ready(msagen_seq_embedding(tok2, table2))
    assert out2.shape == (B2, L2, D2)
    assert jnp.allclose(out2, jnp.take(table2, tok2, axis=0), atol=1e-5), \
        "multi-step / D=128 path mismatch"

    print("KERNEL_OK")
</pallas_src>

<mosaic_0001>
module attributes {stable_mosaic.version = 11 : i64} {
  func.func @_embed_kernel(%arg0: i32, %arg1: memref<64x4xi32, #tpu.memory_space<vmem>>, %arg2: memref<128x128xf32, #tpu.memory_space<vmem>>, %arg3: memref<64x128xf32, #tpu.memory_space<vmem>>) attributes {dimension_semantics = [#tpu.dimension_semantics<parallel>], iteration_bounds = array<i64: 1>, scalar_prefetch = 0 : i64, scratch_operands = 0 : i64, tpu.core_type = #tpu.core_type<tc>, window_params = [{transform_indices = @transform_0, window_bounds = array<i64: 64, 4>}, {pipeline_mode = #tpu.pipeline_mode<synchronous>, transform_indices = @transform_1, window_bounds = array<i64: 128, 128>}, {transform_indices = @transform_2, window_bounds = array<i64: 64, 128>}]} {
    %c0 = arith.constant 0 : index
    %c0_0 = arith.constant 0 : index
    %0 = vector.load %arg1[%c0, %c0_0] : memref<64x4xi32, #tpu.memory_space<vmem>>, vector<64x4xi32>
    %1 = tpu.iota {dimensions = array<i32: 1>} : vector<64x128xi32>
    %2 = vector.extract_strided_slice %0 {offsets = [0, 0], sizes = [64, 1], strides = [1, 1]} : vector<64x4xi32> to vector<64x1xi32>
    %3 = vector.broadcast %2 : vector<64x1xi32> to vector<64x128xi32>
    %4 = arith.cmpi eq, %1, %3 : vector<64x128xi32>
    %5 = vector.extract_strided_slice %0 {offsets = [0, 1], sizes = [64, 1], strides = [1, 1]} : vector<64x4xi32> to vector<64x1xi32>
    %6 = vector.broadcast %5 : vector<64x1xi32> to vector<64x128xi32>
    %7 = arith.cmpi eq, %1, %6 : vector<64x128xi32>
    %8 = arith.ori %4, %7 : vector<64x128xi1>
    %9 = vector.extract_strided_slice %0 {offsets = [0, 2], sizes = [64, 1], strides = [1, 1]} : vector<64x4xi32> to vector<64x1xi32>
    %10 = vector.broadcast %9 : vector<64x1xi32> to vector<64x128xi32>
    %11 = arith.cmpi eq, %1, %10 : vector<64x128xi32>
    %12 = arith.ori %8, %11 : vector<64x128xi1>
    %13 = vector.extract_strided_slice %0 {offsets = [0, 3], sizes = [64, 1], strides = [1, 1]} : vector<64x4xi32> to vector<64x1xi32>
    %14 = vector.broadcast %13 : vector<64x1xi32> to vector<64x128xi32>
    %15 = arith.cmpi eq, %1, %14 : vector<64x128xi32>
    %16 = arith.ori %12, %15 : vector<64x128xi1>
    %17 = arith.extui %16 : vector<64x128xi1> to vector<64x128xi32>
    %18 = arith.sitofp %17 : vector<64x128xi32> to vector<64x128xf32>
    %c0_1 = arith.constant 0 : index
    %c0_2 = arith.constant 0 : index
    %19 = vector.load %arg2[%c0_1, %c0_2] : memref<128x128xf32, #tpu.memory_space<vmem>>, vector<128x128xf32>
    %cst = arith.constant dense<0.000000e+00> : vector<64x128xf32>
    %20 = tpu.matmul %18, %19, %cst {dimension_numbers = #tpu.dot_dimension_numbers<[1], [0], [0], [1], [0, 0, 1, 1], [], []>} : vector<64x128xf32>, vector<128x128xf32>, vector<64x128xf32> -> vector<64x128xf32>
    %c0_3 = arith.constant 0 : index
    %c0_4 = arith.constant 0 : index
    %21 = vector.load %arg3[%c0_3, %c0_4] : memref<64x128xf32, #tpu.memory_space<vmem>>, vector<64x128xf32>
    tpu.vector_store %arg3[%c0_3, %c0_4], %20 {strides = array<i32>} : memref<64x128xf32, #tpu.memory_space<vmem>>, vector<64x128xf32>,
    return
  }
  func.func @transform_0(%arg0: i32) -> (i32, i32) {
    %c0_i32 = arith.constant 0 : i32
    %c0_i32_0 = arith.constant 0 : i32
    return %arg0, %c0_i32 : i32, i32
  }
  func.func @transform_1(%arg0: i32) -> (i32, i32) {
    %c0_i32 = arith.constant 0 : i32
    %c0_i32_0 = arith.constant 0 : i32
    %c0_i32_1 = arith.constant 0 : i32
    return %c0_i32, %c0_i32_0 : i32, i32
  }
  func.func @transform_2(%arg0: i32) -> (i32, i32) {
    %c0_i32 = arith.constant 0 : i32
    %c0_i32_0 = arith.constant 0 : i32
    return %arg0, %c0_i32 : i32, i32
  }
}

</mosaic_0001>

<llo_original>
// kernel: tpu_custom_call.1
$region0: #{tpu_custom_call.1}
  #allocation0 [shape = 'u32[]', space=smem, size = 0x4, offset = 0x4, fixed_abs, tag = 'smem constant byte address 0x4 - core index']
  #allocation1 [shape = 'u32[144,128]{1,0:T(1,128)}', space=vmem, size = 0x12000, scoped, tag = 'internal scratch']
  %s0 = inlined_call_operand.vmem [shape: s32[64,4], index: 0, kind: input, shape index: {}]
  %s1 = inlined_call_operand.hbm [shape: f32[128,128], index: 1, kind: input, shape index: {}]
  %s2 = inlined_call_operand.hbm [shape: f32[64,128], index: 2, kind: output, shape index: {}]
  %s3 = sld [smem:[#allocation0]]
  $region22: #{tpu_custom_call.1} parent=0
    _
  %s5 = ssub.s32 1, %s3
  %s6 = scalar_select 0, %s5, %s3
  $region1: #{tpu_custom_call.1} parent=0
    #allocation2 [shape = 'u8[65536]{0}', space=vmem, size = 0x10000, scoped, tag = 'input window, operand 1, single buffered']
    #allocation3 [shape = 's32[1]{0}', space=sflag, size = 0x4, scoped, tag = 'scoped memory for tpu_custom_call.1']
    #allocation4 [shape = 's32[1]{0}', space=sflag, size = 0x4, scoped, tag = 'scoped memory for tpu_custom_call.1']
    #allocation5 [shape = 'u8[32768]{0}', space=vmem, size = 0x8000, scoped, tag = 'output window, operand 0, single buffered']
    %7 = vsyncpa [#allocation3], 0
    %8 = vsyncpa [#allocation4], 0
    // Predicated region
    $region2: #{tpu_custom_call.1} parent=1 // pred_check
      _
    $region3: #{tpu_custom_call.1} parent=1 // pred_check_branch
      %10 = sbr.rel (0) target = $region5
    $region4: #{tpu_custom_call.1} parent=1 // pred_region
      _
    $region5: #{tpu_custom_call.1} parent=1 // pred_fallthru
      _
    // Predicated region
    $region6: #{tpu_custom_call.1} parent=1 // pred_check
      _
    $region7: #{tpu_custom_call.1} parent=1 // pred_check_branch
      %12 = sbr.rel (0) target = $region9
    $region8: #{tpu_custom_call.1} parent=1 // pred_region
      %s14 = ssub.s32 2048, 2048
      %15 = vsyncadd [#allocation3], %s14
      %s16 = sshll.u32 [#allocation2], 4
      %s17 = int_to_ptr.vmem [resolvable:$true] %s16
      %22 = dma.hbm_to_vmem [thread:$0]  %s1, 2048, %s17, [#allocation3], 128, 128, 8
    $region9: #{tpu_custom_call.1} parent=1 // pred_fallthru
      _
    // Predicated region
    $region10: #{tpu_custom_call.1} parent=1 // pred_check
      _
    $region11: #{tpu_custom_call.1} parent=1 // pred_check_branch
      %24 = sbr.rel (0) target = $region13
    $region12: #{tpu_custom_call.1} parent=1 // pred_region
      %25 = dma.done [#allocation3], 2048
    $region13: #{tpu_custom_call.1} parent=1 // pred_fallthru
      _
    %v26 = vld [vmem:[%s0] sm:$0xff]
    %v27 = vld [vmem:[%s0 + $0x8] sm:$0xff]
    %v28 = vld [vmem:[%s0 + $0x10] sm:$0xff]
    %v29 = vld [vmem:[%s0 + $0x18] sm:$0xff]
    %v30 = vld [vmem:[%s0 + $0x20] sm:$0xff]
    %v31 = vld [vmem:[%s0 + $0x28] sm:$0xff]
    %v32 = vld [vmem:[%s0 + $0x30] sm:$0xff]
    %v33 = vld [vmem:[%s0 + $0x38] sm:$0xff]
    %v34 = vlaneseq
    %v35 = vand.u32 %v34, 127
    %36 = vset.pattern.permute.xlu0 0
    %37 = vperm.xlu0 %36, %v26
    %v38 = vpop.permute.xlu0 %37
    %39 = vset.pattern.permute.xlu0 0
    %40 = vperm.xlu0 %39, %v27
    %v41 = vpop.permute.xlu0 %40
    %42 = vset.pattern.permute.xlu0 0
    %43 = vperm.xlu0 %42, %v28
    %v44 = vpop.permute.xlu0 %43
    %45 = vset.pattern.permute.xlu0 0
    %46 = vperm.xlu0 %45, %v29
    %v47 = vpop.permute.xlu0 %46
    %48 = vset.pattern.permute.xlu0 0
    %49 = vperm.xlu0 %48, %v30
    %v50 = vpop.permute.xlu0 %49
    %51 = vset.pattern.permute.xlu0 0
    %52 = vperm.xlu0 %51, %v31
    %v53 = vpop.permute.xlu0 %52
    %54 = vset.pattern.permute.xlu0 0
    %55 = vperm.xlu0 %54, %v32
    %v56 = vpop.permute.xlu0 %55
    %57 = vset.pattern.permute.xlu0 0
    %58 = vperm.xlu0 %57, %v33
    %v59 = vpop.permute.xlu0 %58
    %vm60 = vcmp.eq.s32.totalorder %v35, %v38
    %vm61 = vcmp.eq.s32.totalorder %v35, %v41
    %vm62 = vcmp.eq.s32.totalorder %v35, %v44
    %vm63 = vcmp.eq.s32.totalorder %v35, %v47
    %vm64 = vcmp.eq.s32.totalorder %v35, %v50
    %vm65 = vcmp.eq.s32.totalorder %v35, %v53
    %vm66 = vcmp.eq.s32.totalorder %v35, %v56
    %vm67 = vcmp.eq.s32.totalorder %v35, %v59
    %68 = vset.pattern.permute.xlu0 1
    %69 = vperm.xlu0 %68, %v26
    %v70 = vpop.permute.xlu0 %69
    %71 = vset.pattern.permute.xlu0 1
    %72 = vperm.xlu0 %71, %v27
    %v73 = vpop.permute.xlu0 %72
    %74 = vset.pattern.permute.xlu0 1
    %75 = vperm.xlu0 %74, %v28
    %v76 = vpop.permute.xlu0 %75
    %77 = vset.pattern.permute.xlu0 1
    %78 = vperm.xlu0 %77, %v29
    %v79 = vpop.permute.xlu0 %78
    %80 = vset.pattern.permute.xlu0 1
    %81 = vperm.xlu0 %80, %v30
    %v82 = vpop.permute.xlu0 %81
    %83 = vset.pattern.permute.xlu0 1
    %84 = vperm.xlu0 %83, %v31
    %v85 = vpop.permute.xlu0 %84
    %86 = vset.pattern.permute.xlu0 1
    %87 = vperm.xlu0 %86, %v32
    %v88 = vpop.permute.xlu0 %87
    %89 = vset.pattern.permute.xlu0 1
    %90 = vperm.xlu0 %89, %v33
    %v91 = vpop.permute.xlu0 %90
    %vm92 = vcmp.eq.s32.totalorder %v35, %v70
    %vm93 = vcmp.eq.s32.totalorder %v35, %v73
    %vm94 = vcmp.eq.s32.totalorder %v35, %v76
    %vm95 = vcmp.eq.s32.totalorder %v35, %v79
    %vm96 = vcmp.eq.s32.totalorder %v35, %v82
    %vm97 = vcmp.eq.s32.totalorder %v35, %v85
    %vm98 = vcmp.eq.s32.totalorder %v35, %v88
    %vm99 = vcmp.eq.s32.totalorder %v35, %v91
    %vm100 = vmor %vm60, %vm92
    %vm101 = vmor %vm61, %vm93
    %vm102 = vmor %vm62, %vm94
    %vm103 = vmor %vm63, %vm95
    %vm104 = vmor %vm64, %vm96
    %vm105 = vmor %vm65, %vm97
    %vm106 = vmor %vm66, %vm98
    %vm107 = vmor %vm67, %vm99
    %108 = vset.pattern.permute.xlu0 2
    %109 = vperm.xlu0 %108, %v26
    %v110 = vpop.permute.xlu0 %109
    %111 = vset.pattern.permute.xlu0 2
    %112 = vperm.xlu0 %111, %v27
    %v113 = vpop.permute.xlu0 %112
    %114 = vset.pattern.permute.xlu0 2
    %115 = vperm.xlu0 %114, %v28
    %v116 = vpop.permute.xlu0 %115
    %117 = vset.pattern.permute.xlu0 2
    %118 = vperm.xlu0 %117, %v29
    %v119 = vpop.permute.xlu0 %118
    %120 = vset.pattern.permute.xlu0 2
    %121 = vperm.xlu0 %120, %v30
    %v122 = vpop.permute.xlu0 %121
    %123 = vset.pattern.permute.xlu0 2
    %124 = vperm.xlu0 %123, %v31
    %v125 = vpop.permute.xlu0 %124
    %126 = vset.pattern.permute.xlu0 2
    %127 = vperm.xlu0 %126, %v32
    %v128 = vpop.permute.xlu0 %127
    %129 = vset.pattern.permute.xlu0 2
    %130 = vperm.xlu0 %129, %v33
    %v131 = vpop.permute.xlu0 %130
    %vm132 = vcmp.eq.s32.totalorder %v35, %v110
    %vm133 = vcmp.eq.s32.totalorder %v35, %v113
    %vm134 = vcmp.eq.s32.totalorder %v35, %v116
    %vm135 = vcmp.eq.s32.totalorder %v35, %v119
    %vm136 = vcmp.eq.s32.totalorder %v35, %v122
    %vm137 = vcmp.eq.s32.totalorder %v35, %v125
    %vm138 = vcmp.eq.s32.totalorder %v35, %v128
    %vm139 = vcmp.eq.s32.totalorder %v35, %v131
    %vm140 = vmor %vm100, %vm132
    %vm141 = vmor %vm101, %vm133
    %vm142 = vmor %vm102, %vm134
    %vm143 = vmor %vm103, %vm135
    %vm144 = vmor %vm104, %vm136
    %vm145 = vmor %vm105, %vm137
    %vm146 = vmor %vm106, %vm138
    %vm147 = vmor %vm107, %vm139
    %148 = vset.pattern.permute.xlu0 3
    %149 = vperm.xlu0 %148, %v26
    %v150 = vpop.permute.xlu0 %149
    %151 = vset.pattern.permute.xlu0 3
    %152 = vperm.xlu0 %151, %v27
    %v153 = vpop.permute.xlu0 %152
    %154 = vset.pattern.permute.xlu0 3
    %155 = vperm.xlu0 %154, %v28
    %v156 = vpop.permute.xlu0 %155
    %157 = vset.pattern.permute.xlu0 3
    %158 = vperm.xlu0 %157, %v29
    %v159 = vpop.permute.xlu0 %158
    %160 = vset.pattern.permute.xlu0 3
    %161 = vperm.xlu0 %160, %v30
    %v162 = vpop.permute.xlu0 %161
    %163 = vset.pattern.permute.xlu0 3
    %164 = vperm.xlu0 %163, %v31
    %v165 = vpop.permute.xlu0 %164
    %166 = vset.pattern.permute.xlu0 3
    %167 = vperm.xlu0 %166, %v32
    %v168 = vpop.permute.xlu0 %167
    %169 = vset.pattern.permute.xlu0 3
    %170 = vperm.xlu0 %169, %v33
    %v171 = vpop.permute.xlu0 %170
    %vm172 = vcmp.eq.s32.totalorder %v35, %v150
    %vm173 = vcmp.eq.s32.totalorder %v35, %v153
    %vm174 = vcmp.eq.s32.totalorder %v35, %v156
    %vm175 = vcmp.eq.s32.totalorder %v35, %v159
    %vm176 = vcmp.eq.s32.totalorder %v35, %v162
    %vm177 = vcmp.eq.s32.totalorder %v35, %v165
    %vm178 = vcmp.eq.s32.totalorder %v35, %v168
    %vm179 = vcmp.eq.s32.totalorder %v35, %v171
    %vm180 = vmor %vm140, %vm172
    %vm181 = vmor %vm141, %vm173
    %vm182 = vmor %vm142, %vm174
    %vm183 = vmor %vm143, %vm175
    %vm184 = vmor %vm144, %vm176
    %vm185 = vmor %vm145, %vm177
    %vm186 = vmor %vm146, %vm178
    %vm187 = vmor %vm147, %vm179
    %v188 = vsel %vm180, 1, 0
    %v189 = vsel %vm181, 1, 0
    %v190 = vsel %vm182, 1, 0
    %v191 = vsel %vm183, 1, 0
    %v192 = vsel %vm184, 1, 0
    %v193 = vsel %vm185, 1, 0
    %v194 = vsel %vm186, 1, 0
    %v195 = vsel %vm187, 1, 0
    %v196 = vcvt.s32.f32 %v188
    %v197 = vcvt.s32.f32 %v189
    %v198 = vcvt.s32.f32 %v190
    %v199 = vcvt.s32.f32 %v191
    %v200 = vcvt.s32.f32 %v192
    %v201 = vcvt.s32.f32 %v193
    %v202 = vcvt.s32.f32 %v194
    %v203 = vcvt.s32.f32 %v195
    %v204 = vld [vmem:[#allocation2] sm:$0xff]
    %v205 = vld [vmem:[#allocation2 + $0x8] sm:$0xff]
    %v206 = vld [vmem:[#allocation2 + $0x10] sm:$0xff]
    %v207 = vld [vmem:[#allocation2 + $0x18] sm:$0xff]
    %v208 = vld [vmem:[#allocation2 + $0x20] sm:$0xff]
    %v209 = vld [vmem:[#allocation2 + $0x28] sm:$0xff]
    %v210 = vld [vmem:[#allocation2 + $0x30] sm:$0xff]
    %v211 = vld [vmem:[#allocation2 + $0x38] sm:$0xff]
    %v212 = vld [vmem:[#allocation2 + $0x40] sm:$0xff]
    %v213 = vld [vmem:[#allocation2 + $0x48] sm:$0xff]
    %v214 = vld [vmem:[#allocation2 + $0x50] sm:$0xff]
    %v215 = vld [vmem:[#allocation2 + $0x58] sm:$0xff]
    %v216 = vld [vmem:[#allocation2 + $0x60] sm:$0xff]
    %v217 = vld [vmem:[#allocation2 + $0x68] sm:$0xff]
    %v218 = vld [vmem:[#allocation2 + $0x70] sm:$0xff]
    %v219 = vld [vmem:[#allocation2 + $0x78] sm:$0xff]
    %220 = vmatprep.subr.mxu0 0.0
    %221 = vmatpush1.msra.mxu0 %v219
    %222 = vmatprep.subr.mxu0 0.0
    %223 = vmatpush1.msra.mxu0 %v218
    %224 = vmatprep.subr.mxu0 0.0
    %225 = vmatpush1.msra.mxu0 %v217
    %226 = vmatprep.subr.mxu0 0.0
    %227 = vmatpush1.msra.mxu0 %v216
    %228 = vmatprep.subr.mxu0 0.0
    %229 = vmatpush1.msra.mxu0 %v215
    %230 = vmatprep.subr.mxu0 0.0
    %231 = vmatpush1.msra.mxu0 %v214
    %232 = vmatprep.subr.mxu0 0.0
    %233 = vmatpush1.msra.mxu0 %v213
    %234 = vmatprep.subr.mxu0 0.0
    %235 = vmatpush1.msra.mxu0 %v212
    %236 = vmatprep.subr.mxu0 0.0
    %237 = vmatpush1.msra.mxu0 %v211
    %238 = vmatprep.subr.mxu0 0.0
    %239 = vmatpush1.msra.mxu0 %v210
    %240 = vmatprep.subr.mxu0 0.0
    %241 = vmatpush1.msra.mxu0 %v209
    %242 = vmatprep.subr.mxu0 0.0
    %243 = vmatpush1.msra.mxu0 %v208
    %244 = vmatprep.subr.mxu0 0.0
    %245 = vmatpush1.msra.mxu0 %v207
    %246 = vmatprep.subr.mxu0 0.0
    %247 = vmatpush1.msra.mxu0 %v206
    %248 = vmatprep.subr.mxu0 0.0
    %249 = vmatpush1.msra.mxu0 %v205
    %250 = vmatprep.subr.mxu0 0.0
    %251 = vmatpush1.msra.mxu0 %v204
    %252 = vmatprep.subr.mxu0 0.0
    %253 = vmatpush2.msra.mxu0 0.0
    %254 = vmatprep.subr.mxu0 0.0
    %255 = vmatpush2.msra.mxu0 0.0
    %256 = vmatprep.subr.mxu0 0.0
    %257 = vmatpush2.msra.mxu0 0.0
    %258 = vmatprep.subr.mxu0 0.0
    %259 = vmatpush2.msra.mxu0 0.0
    %260 = vmatprep.subr.mxu0 0.0
    %261 = vmatpush2.msra.mxu0 0.0
    %262 = vmatprep.subr.mxu0 0.0
    %263 = vmatpush2.msra.mxu0 0.0
    %264 = vmatprep.subr.mxu0 0.0
    %265 = vmatpush2.msra.mxu0 0.0
    %266 = vmatprep.subr.mxu0 0.0
    %267 = vmatpush2.msra.mxu0 0.0
    %268 = vmatprep.subr.mxu0 0.0
    %269 = vmatpush2.msra.mxu0 0.0
    %270 = vmatprep.subr.mxu0 0.0
    %271 = vmatpush2.msra.mxu0 0.0
    %272 = vmatprep.subr.mxu0 0.0
    %273 = vmatpush2.msra.mxu0 0.0
    %274 = vmatprep.subr.mxu0 0.0
    %275 = vmatpush2.msra.mxu0 0.0
    %276 = vmatprep.subr.mxu0 0.0
    %277 = vmatpush2.msra.mxu0 0.0
    %278 = vmatprep.subr.mxu0 0.0
    %279 = vmatpush2.msra.mxu0 0.0
    %280 = vmatprep.subr.mxu0 0.0
    %281 = vmatpush2.msra.mxu0 0.0
    %282 = vmatprep.subr.mxu0 0.0
    %283 = vmatpush2.msra.mxu0 0.0
    %284 = vmatprep.mubr.f32.mxu0 0.0
    %285 = vmatmul.mubr.f32.gmra.mxu0 %v196
    %v286 = vpop.f32.mrf.mxu0
    %v287 = vadd.f32 0.0, %v286
    %v288 = vpop.f32.mrf.mxu0
    %289 = vmatprep.mubr.f32.mxu0 0.0
    %290 = vmatmul.mubr.f32.gmra.mxu0 %v197
    %v291 = vpop.f32.mrf.mxu0
    %v292 = vadd.f32 0.0, %v291
    %v293 = vpop.f32.mrf.mxu0
    %294 = vmatprep.mubr.f32.mxu0 0.0
    %295 = vmatmul.mubr.f32.gmra.mxu0 %v198
    %v296 = vpop.f32.mrf.mxu0
    %v297 = vadd.f32 0.0, %v296
    %v298 = vpop.f32.mrf.mxu0
    %299 = vmatprep.mubr.f32.mxu0 0.0
    %300 = vmatmul.mubr.f32.gmra.mxu0 %v199
    %v301 = vpop.f32.mrf.mxu0
    %v302 = vadd.f32 0.0, %v301
    %v303 = vpop.f32.mrf.mxu0
    %304 = vmatprep.mubr.f32.mxu0 0.0
    %305 = vmatmul.mubr.f32.gmra.mxu0 %v200
    %v306 = vpop.f32.mrf.mxu0
    %v307 = vadd.f32 0.0, %v306
    %v308 = vpop.f32.mrf.mxu0
    %309 = vmatprep.mubr.f32.mxu0 0.0
    %310 = vmatmul.mubr.f32.gmra.mxu0 %v201
    %v311 = vpop.f32.mrf.mxu0
    %v312 = vadd.f32 0.0, %v311
    %v313 = vpop.f32.mrf.mxu0
    %314 = vmatprep.mubr.f32.mxu0 0.0
    %315 = vmatmul.mubr.f32.gmra.mxu0 %v202
    %v316 = vpop.f32.mrf.mxu0
    %v317 = vadd.f32 0.0, %v316
    %v318 = vpop.f32.mrf.mxu0
    %319 = vmatprep.mubr.f32.mxu0 0.0
    %320 = vmatmul.mubr.f32.gmra.mxu0 %v203
    %v321 = vpop.f32.mrf.mxu0
    %v322 = vadd.f32 0.0, %v321
    %v323 = vpop.f32.mrf.mxu0
    %324 = vdwg.mxu0
    %325 = vst [vmem:[#allocation5] sm:$0xff] %v287
    %326 = vst [vmem:[#allocation5 + $0x8] sm:$0xff] %v292
    %327 = vst [vmem:[#allocation5 + $0x10] sm:$0xff] %v297
    %328 = vst [vmem:[#allocation5 + $0x18] sm:$0xff] %v302
    %329 = vst [vmem:[#allocation5 + $0x20] sm:$0xff] %v307
    %330 = vst [vmem:[#allocation5 + $0x28] sm:$0xff] %v312
    %331 = vst [vmem:[#allocation5 + $0x30] sm:$0xff] %v317
    %332 = vst [vmem:[#allocation5 + $0x38] sm:$0xff] %v322
    // Predicated region
    $region14: #{tpu_custom_call.1} parent=1 // pred_check
      _
    $region15: #{tpu_custom_call.1} parent=1 // pred_check_branch
      %334 = sbr.rel (0) target = $region17
    $region16: #{tpu_custom_call.1} parent=1 // pred_region
      %s336 = ssub.s32 1024, 1024
      %337 = vsyncadd [#allocation4], %s336
      %s338 = sshll.u32 [#allocation5], 4
      %s339 = int_to_ptr.vmem [resolvable:$true] %s338
      %344 = dma.vmem_to_hbm [thread:$0]  %s339, 1024, %s2, [#allocation4], 128, 128, 8
    $region17: #{tpu_custom_call.1} parent=1 // pred_fallthru
      _
    // Predicated region
    $region18: #{tpu_custom_call.1} parent=1 // pred_check
      _
    $region19: #{tpu_custom_call.1} parent=1 // pred_check_branch
      %346 = sbr.rel (0) target = $region21
    $region20: #{tpu_custom_call.1} parent=1 // pred_region
      %347 = dma.done [#allocation4], 1024
    $region21: #{tpu_custom_call.1} parent=1 // pred_fallthru
      _
    %348 = vsyncpa [#allocation3], 1
    %349 = vsyncpa [#allocation4], 1

</llo_original>
